<compile_context>
chip_gen: v6e
topology: v6e:2x2x1
jax: 0.10.0
libtpu: 0.0.40
codegen_flags: <defaults>
</compile_context>

<pallas_src>
import math

import jax
import jax.numpy as jnp
from jax.experimental import pallas as pl
from jax.experimental.pallas import tpu as pltpu

ALPHA = math.sqrt(0.5)   # unused for layer_num == 1 (kept for completeness)
BETA = math.sqrt(0.5)
GAMMA = math.sqrt(0.5)
DELTA = math.sqrt(0.5)   # unused for layer_num == 1

OUT_LANES = 128          # lane-dense output / bias-pack width
OUT_SUBLANES = 8


def _make_gcn_kernel(n, in_feats, d, o, od):
    """Kernel closure over the (static, Python-int) problem dimensions."""

    def kernel(node_ref, w_ref, b_ref, head_ref, out_ref):
        # ---- unpack the fused buffers (static slices on loaded values) --------
        node = node_ref[...]
        w = w_ref[...]
        b = b_ref[...]
        head = head_ref[...]

        feats = node[:, 0:in_feats]                              # (n, in)
        a_msg = node[:, in_feats:in_feats + n]                   # (n, n)  == A^T
        dinv_src = node[:, in_feats + n:in_feats + n + 1]        # (n, 1) out-deg^-1/2
        dinv_dst = node[:, in_feats + n + 1:in_feats + n + 2]    # (n, 1) in-deg^-1/2
        gmask = node[:, in_feats + n + 2:in_feats + n + 3]       # gamma at node 0

        w0 = w[0:in_feats, :]                                    # (in, d)
        w1 = w[in_feats:in_feats + d, :]                         # (d, d)
        wg = w[in_feats + d:in_feats + 2 * d, :]                 # (d, d)

        # ---- normalize(): 10 * L1-normalize along nodes (dim 0) ---------------
        col_l1 = jnp.maximum(jnp.sum(jnp.abs(feats), axis=0, keepdims=True), 1e-12)
        x = (10.0 * feats) / col_l1

        # ---- LRM stack: two Linear layers (dropout disabled) -------------------
        x = jnp.dot(x, w0, preferred_element_type=jnp.float32) + b[0:1, 0:d]
        x = jnp.dot(x, w1, preferred_element_type=jnp.float32) + b[1:2, 0:d]

        # ---- GraphConv, norm='both': left norm -> aggregate -> weight -> right norm
        h = x * dinv_src
        agg = jnp.dot(a_msg, h, preferred_element_type=jnp.float32)
        rst = jnp.dot(agg, wg, preferred_element_type=jnp.float32)
        rst = rst * dinv_dst + b[2:3, 0:d]

        # ---- residual combine with row 0 of the LRM output, then ReLU ----------
        x = jnp.maximum(BETA * rst + gmask * x, 0.0)             # (n, d)

        # ---- folded FC head: out[o'] = sum_{node,feat} x * Wc + c --------------
        w_head = head[0:n, 0:od]                                 # (n, o*d) lane-dense
        rsel = head[n:n + od, 0:OUT_LANES]                       # (o*d, 128) one-hot
        xt = jnp.concatenate([x] * o, axis=1)                    # (n, o*d)
        colsum = jnp.sum(xt * w_head, axis=0, keepdims=True)     # (1, o*d)
        res = jnp.dot(colsum, rsel,
                      preferred_element_type=jnp.float32) + b[3:4, :]
        out_ref[...] = jnp.broadcast_to(res, (OUT_SUBLANES, OUT_LANES))

    return kernel


def gcn_forward(F, A, params):
    """Full GCN forward as one Pallas call; all host work is static param/graph prep."""
    w0, b0, w1, b1, wg, bg, wfc1, bfc1, wfc2, bfc2 = params
    n, in_feats = F.shape
    d = w0.shape[1]
    o = wfc1.shape[1]
    od = o * d
    lane_w = max(od, OUT_LANES)

    F = F.astype(jnp.float32)
    A = A.astype(jnp.float32)

    # ---- graph-static normalizers + first-row selector (host precompute) ------
    dinv_src = jnp.maximum(A.sum(axis=1), 1.0) ** -0.5           # out-degree norm
    dinv_dst = jnp.maximum(A.sum(axis=0), 1.0) ** -0.5           # in-degree norm
    gmask = jnp.zeros((n,), jnp.float32).at[0].set(GAMMA)

    # input pack 1: [F | A^T | dinv_src | dinv_dst | gamma_mask]   (n, in+n+3)
    node_pack = jnp.concatenate(
        [F, A.T, dinv_src[:, None], dinv_dst[:, None], gmask[:, None]], axis=1)

    # input pack 2: [w0 ; w1 ; wg] stacked on rows (shared lrm_dim columns)
    w_pack = jnp.concatenate([w0, w1, wg], axis=0)               # (in + 2d, d)

    # Fold FC head: Linear(d->o) -> Flatten(0,-1) -> Linear(n*o->o)
    #   out[o'] = sum_{node,feat} relu_x[node,feat] * Wc[node,feat,o'] + c[o']
    wfc2_blk = wfc2.reshape(n, o, o)
    w_comb = jnp.einsum('dk,nko->ndo', wfc1, wfc2_blk)           # (n, d, o)
    w_head = w_comb.transpose(0, 2, 1).reshape(n, od)            # 2D lane-dense
    w_head = jnp.pad(w_head, ((0, 0), (0, lane_w - od)))
    head_bias = bfc1 @ wfc2_blk.sum(axis=0) + bfc2               # (o,)

    # one-hot lane-group reducer: rsel[j, o'] = 1 iff j // d == o'
    rsel = (jnp.arange(od)[:, None] // d
            == jnp.arange(OUT_LANES)[None, :]).astype(jnp.float32)
    rsel = jnp.pad(rsel, ((0, 0), (0, lane_w - OUT_LANES)))

    # input pack 3: folded head weight + reducer        (n + o*d, lane_w)
    head_pack = jnp.concatenate([w_head, rsel], axis=0)

    # input pack 4: all biases in one lane-dense (8, 128) buffer
    b_pack = jnp.zeros((8, OUT_LANES), jnp.float32)
    b_pack = b_pack.at[0, :d].set(b0).at[1, :d].set(b1).at[2, :d].set(bg)
    b_pack = b_pack.at[3, :o].set(head_bias)

    kernel = _make_gcn_kernel(n, in_feats, d, o, od)
    vmem = pl.BlockSpec(memory_space=pltpu.MemorySpace.VMEM)
    out = pl.pallas_call(
        kernel,
        out_shape=jax.ShapeDtypeStruct((OUT_SUBLANES, OUT_LANES), jnp.float32),
        in_specs=[vmem, vmem, vmem, vmem],
        out_specs=vmem,
    )(node_pack, w_pack, b_pack, head_pack)
    return out[0, :o]                                            # (out_feats,)


def xinit_std(mean_A, var_A, var_F, n, d):
    std_list = [math.sqrt(2.0 * v / (d * n * var_A * v + d * mean_A ** 2)) for v in var_F]
    return sum(std_list) / len(std_list)


def init_params(key, in_feats, lrm_dim, out_feats, num_nodes, mean_A, var_A, var_F):
    ks = jax.random.split(key, 10)
    # LRM linears (deterministic synthetic init; nn.Linear shapes)
    w0 = jax.random.normal(ks[0], (in_feats, lrm_dim), jnp.float32) / math.sqrt(in_feats)
    b0 = 0.01 * jax.random.normal(ks[1], (lrm_dim,), jnp.float32)
    w1 = jax.random.normal(ks[2], (lrm_dim, lrm_dim), jnp.float32) / math.sqrt(lrm_dim)
    b1 = 0.01 * jax.random.normal(ks[3], (lrm_dim,), jnp.float32)
    # GraphConv weight via xinitialization (d x d normal, std from var_F), bias zeros
    std = xinit_std(mean_A, var_A, var_F, num_nodes, lrm_dim)
    wg = std * jax.random.normal(ks[4], (lrm_dim, lrm_dim), jnp.float32)
    bg = jnp.zeros((lrm_dim,), jnp.float32)
    # FC head
    wfc1 = jax.random.normal(ks[5], (lrm_dim, out_feats), jnp.float32) / math.sqrt(lrm_dim)
    bfc1 = 0.01 * jax.random.normal(ks[6], (out_feats,), jnp.float32)
    wfc2 = jax.random.normal(ks[7], (num_nodes * out_feats, out_feats), jnp.float32) \
        / math.sqrt(num_nodes * out_feats)
    bfc2 = 0.01 * jax.random.normal(ks[8], (out_feats,), jnp.float32)
    return (w0, b0, w1, b1, wg, bg, wfc1, bfc1, wfc2, bfc2)


def gcn_reference(F, A, params):
    """Pure-JAX reference mirroring the PyTorch/DGL forward (for correctness check)."""
    w0, b0, w1, b1, wg, bg, wfc1, bfc1, wfc2, bfc2 = params
    col = jnp.maximum(jnp.sum(jnp.abs(F), axis=0, keepdims=True), 1e-12)
    x = 10.0 * F / col
    x = x @ w0 + b0
    x = x @ w1 + b1
    out_deg = jnp.maximum(A.sum(axis=1), 1.0)
    in_deg = jnp.maximum(A.sum(axis=0), 1.0)
    h = x * (out_deg ** -0.5)[:, None]
    agg = A.T @ h                                   # message passing: dst sums in-edges
    rst = (agg @ wg) * (in_deg ** -0.5)[:, None] + bg
    first = jnp.concatenate(
        [x[:1], jnp.zeros((F.shape[0] - 1, x.shape[1]), jnp.float32)], axis=0)
    x = BETA * rst + GAMMA * first
    x = jnp.maximum(x, 0.0)
    y1 = x @ wfc1 + bfc1
    return y1.reshape(-1) @ wfc2 + bfc2


if __name__ == "__main__":
    NUM_NODES = 8
    IN_FEATS = 16
    LRM_DIM = 32
    OUT_FEATS = 4
    MEAN_A, VAR_A = 0.3, 0.1
    VAR_F = [1.0, 0.5, 2.0]

    key = jax.random.PRNGKey(0)
    kf, ka, kp = jax.random.split(key, 3)

    # node features
    F = jax.random.normal(kf, (NUM_NODES, IN_FEATS), jnp.float32)

    # random symmetric adjacency with self-loops (dgl.add_self_loop equivalent)
    rand = (jax.random.uniform(ka, (NUM_NODES, NUM_NODES)) < 0.4).astype(jnp.float32)
    A = jnp.clip(rand + rand.T, 0.0, 1.0)
    A = jnp.where(jnp.eye(NUM_NODES, dtype=bool), 1.0, A)

    params = init_params(kp, IN_FEATS, LRM_DIM, OUT_FEATS, NUM_NODES,
                         MEAN_A, VAR_A, VAR_F)

    out = gcn_forward(F, A, params)
    out = jax.block_until_ready(out)

    ref = gcn_reference(F, A, params)
    assert out.shape == (OUT_FEATS,)
    assert jnp.allclose(out, ref, atol=1e-4, rtol=1e-4), (out, ref)

    print("KERNEL_OK")
</pallas_src>

<mosaic_0001>
module attributes {stable_mosaic.version = 11 : i64} {
  func.func @kernel(%arg0: memref<8x27xf32, #tpu.memory_space<vmem>>, %arg1: memref<80x32xf32, #tpu.memory_space<vmem>>, %arg2: memref<8x128xf32, #tpu.memory_space<vmem>>, %arg3: memref<136x128xf32, #tpu.memory_space<vmem>>, %arg4: memref<8x128xf32, #tpu.memory_space<vmem>>) attributes {dimension_semantics = [], scalar_prefetch = 0 : i64, scratch_operands = 0 : i64, tpu.core_type = #tpu.core_type<tc>} {
    %c0 = arith.constant 0 : index
    %c0_0 = arith.constant 0 : index
    %0 = vector.load %arg0[%c0, %c0_0] : memref<8x27xf32, #tpu.memory_space<vmem>>, vector<8x27xf32>
    %c0_1 = arith.constant 0 : index
    %c0_2 = arith.constant 0 : index
    %1 = vector.load %arg1[%c0_1, %c0_2] : memref<80x32xf32, #tpu.memory_space<vmem>>, vector<80x32xf32>
    %c0_3 = arith.constant 0 : index
    %c0_4 = arith.constant 0 : index
    %2 = vector.load %arg2[%c0_3, %c0_4] : memref<8x128xf32, #tpu.memory_space<vmem>>, vector<8x128xf32>
    %c0_5 = arith.constant 0 : index
    %c0_6 = arith.constant 0 : index
    %3 = vector.load %arg3[%c0_5, %c0_6] : memref<136x128xf32, #tpu.memory_space<vmem>>, vector<136x128xf32>
    %4 = vector.extract_strided_slice %0 {offsets = [0, 0], sizes = [8, 16], strides = [1, 1]} : vector<8x27xf32> to vector<8x16xf32>
    %5 = vector.extract_strided_slice %0 {offsets = [0, 16], sizes = [8, 8], strides = [1, 1]} : vector<8x27xf32> to vector<8x8xf32>
    %6 = vector.extract_strided_slice %0 {offsets = [0, 24], sizes = [8, 1], strides = [1, 1]} : vector<8x27xf32> to vector<8x1xf32>
    %7 = vector.extract_strided_slice %0 {offsets = [0, 25], sizes = [8, 1], strides = [1, 1]} : vector<8x27xf32> to vector<8x1xf32>
    %8 = vector.extract_strided_slice %0 {offsets = [0, 26], sizes = [8, 1], strides = [1, 1]} : vector<8x27xf32> to vector<8x1xf32>
    %9 = vector.extract_strided_slice %1 {offsets = [0, 0], sizes = [16, 32], strides = [1, 1]} : vector<80x32xf32> to vector<16x32xf32>
    %10 = vector.extract_strided_slice %1 {offsets = [16, 0], sizes = [32, 32], strides = [1, 1]} : vector<80x32xf32> to vector<32x32xf32>
    %11 = vector.extract_strided_slice %1 {offsets = [48, 0], sizes = [32, 32], strides = [1, 1]} : vector<80x32xf32> to vector<32x32xf32>
    %12 = math.absf %4 : vector<8x16xf32>
    %cst = arith.constant dense<0.000000e+00> : vector<16xf32>
    %13 = vector.multi_reduction <add>, %12, %cst [0] : vector<8x16xf32> to vector<16xf32>
    %14 = vector.shape_cast %13 : vector<16xf32> to vector<1x16xf32>
    %cst_7 = arith.constant 9.99999996E-13 : f32
    %15 = vector.broadcast %cst_7 : f32 to vector<1x16xf32>
    %16 = arith.maximumf %14, %15 : vector<1x16xf32>
    %cst_8 = arith.constant 1.000000e+01 : f32
    %17 = vector.broadcast %cst_8 : f32 to vector<8x16xf32>
    %18 = arith.mulf %17, %4 : vector<8x16xf32>
    %19 = vector.broadcast %16 : vector<1x16xf32> to vector<8x16xf32>
    %20 = arith.divf %18, %19 : vector<8x16xf32>
    %cst_9 = arith.constant dense<0.000000e+00> : vector<8x32xf32>
    %21 = tpu.matmul %20, %9, %cst_9 {dimension_numbers = #tpu.dot_dimension_numbers<[1], [0], [0], [1], [0, 0, 1, 1], [], []>} : vector<8x16xf32>, vector<16x32xf32>, vector<8x32xf32> -> vector<8x32xf32>
    %22 = vector.extract_strided_slice %2 {offsets = [0, 0], sizes = [1, 32], strides = [1, 1]} : vector<8x128xf32> to vector<1x32xf32>
    %23 = vector.broadcast %22 : vector<1x32xf32> to vector<8x32xf32>
    %24 = arith.addf %21, %23 : vector<8x32xf32>
    %cst_10 = arith.constant dense<0.000000e+00> : vector<8x32xf32>
    %25 = tpu.matmul %24, %10, %cst_10 {dimension_numbers = #tpu.dot_dimension_numbers<[1], [0], [0], [1], [0, 0, 1, 1], [], []>} : vector<8x32xf32>, vector<32x32xf32>, vector<8x32xf32> -> vector<8x32xf32>
    %26 = vector.extract_strided_slice %2 {offsets = [1, 0], sizes = [1, 32], strides = [1, 1]} : vector<8x128xf32> to vector<1x32xf32>
    %27 = vector.broadcast %26 : vector<1x32xf32> to vector<8x32xf32>
    %28 = arith.addf %25, %27 : vector<8x32xf32>
    %29 = vector.broadcast %6 : vector<8x1xf32> to vector<8x32xf32>
    %30 = arith.mulf %28, %29 : vector<8x32xf32>
    %cst_11 = arith.constant dense<0.000000e+00> : vector<8x32xf32>
    %31 = tpu.matmul %5, %30, %cst_11 {dimension_numbers = #tpu.dot_dimension_numbers<[1], [0], [0], [1], [0, 0, 1, 1], [], []>} : vector<8x8xf32>, vector<8x32xf32>, vector<8x32xf32> -> vector<8x32xf32>
    %cst_12 = arith.constant dense<0.000000e+00> : vector<8x32xf32>
    %32 = tpu.matmul %31, %11, %cst_12 {dimension_numbers = #tpu.dot_dimension_numbers<[1], [0], [0], [1], [0, 0, 1, 1], [], []>} : vector<8x32xf32>, vector<32x32xf32>, vector<8x32xf32> -> vector<8x32xf32>
    %33 = vector.broadcast %7 : vector<8x1xf32> to vector<8x32xf32>
    %34 = arith.mulf %32, %33 : vector<8x32xf32>
    %35 = vector.extract_strided_slice %2 {offsets = [2, 0], sizes = [1, 32], strides = [1, 1]} : vector<8x128xf32> to vector<1x32xf32>
    %36 = vector.broadcast %35 : vector<1x32xf32> to vector<8x32xf32>
    %37 = arith.addf %34, %36 : vector<8x32xf32>
    %cst_13 = arith.constant 0.707106769 : f32
    %38 = vector.broadcast %cst_13 : f32 to vector<8x32xf32>
    %39 = arith.mulf %38, %37 : vector<8x32xf32>
    %40 = vector.broadcast %8 : vector<8x1xf32> to vector<8x32xf32>
    %41 = arith.mulf %40, %28 : vector<8x32xf32>
    %42 = arith.addf %39, %41 : vector<8x32xf32>
    %cst_14 = arith.constant 0.000000e+00 : f32
    %43 = vector.broadcast %cst_14 : f32 to vector<8x32xf32>
    %44 = arith.maximumf %42, %43 : vector<8x32xf32>
    %45 = vector.extract_strided_slice %3 {offsets = [0, 0], sizes = [8, 128], strides = [1, 1]} : vector<136x128xf32> to vector<8x128xf32>
    %46 = vector.extract_strided_slice %3 {offsets = [8, 0], sizes = [128, 128], strides = [1, 1]} : vector<136x128xf32> to vector<128x128xf32>
    %47 = tpu.concatenate %44, %44, %44, %44 in 1 : vector<8x32xf32>, vector<8x32xf32>, vector<8x32xf32>, vector<8x32xf32> -> vector<8x128xf32>
    %48 = arith.mulf %47, %45 : vector<8x128xf32>
    %cst_15 = arith.constant dense<0.000000e+00> : vector<128xf32>
    %49 = vector.multi_reduction <add>, %48, %cst_15 [0] : vector<8x128xf32> to vector<128xf32>
    %50 = vector.shape_cast %49 : vector<128xf32> to vector<1x128xf32>
    %cst_16 = arith.constant dense<0.000000e+00> : vector<1x128xf32>
    %51 = tpu.matmul %50, %46, %cst_16 {dimension_numbers = #tpu.dot_dimension_numbers<[1], [0], [0], [1], [0, 0, 1, 1], [], []>} : vector<1x128xf32>, vector<128x128xf32>, vector<1x128xf32> -> vector<1x128xf32>
    %52 = vector.extract_strided_slice %2 {offsets = [3, 0], sizes = [1, 128], strides = [1, 1]} : vector<8x128xf32> to vector<1x128xf32>
    %53 = arith.addf %51, %52 : vector<1x128xf32>
    %54 = vector.shape_cast %53 : vector<1x128xf32> to vector<1x128xf32>
    %55 = vector.broadcast %54 : vector<1x128xf32> to vector<8x128xf32>
    %c0_17 = arith.constant 0 : index
    %c0_18 = arith.constant 0 : index
    %56 = vector.load %arg4[%c0_17, %c0_18] : memref<8x128xf32, #tpu.memory_space<vmem>>, vector<8x128xf32>
    tpu.vector_store %arg4[%c0_17, %c0_18], %55 {strides = array<i32>} : memref<8x128xf32, #tpu.memory_space<vmem>>, vector<8x128xf32>,
    return
  }
}

</mosaic_0001>

<llo_original>
// kernel: tpu_custom_call.1
$region0: #{tpu_custom_call.1}
  #allocation0 [shape = 'u32[]', space=smem, size = 0x4, offset = 0x4, fixed_abs, tag = 'smem constant byte address 0x4 - core index']
  #allocation1 [shape = 'u32[144,128]{1,0:T(1,128)}', space=vmem, size = 0x12000, scoped, tag = 'internal scratch']
  %s0 = inlined_call_operand.vmem [shape: f32[8,27], index: 0, kind: input, shape index: {}]
  %s1 = inlined_call_operand.vmem [shape: f32[80,32], index: 1, kind: input, shape index: {}]
  %s2 = inlined_call_operand.vmem [shape: f32[8,128], index: 2, kind: input, shape index: {}]
  %s3 = inlined_call_operand.hbm [shape: f32[136,128], index: 3, kind: input, shape index: {}]
  %s4 = inlined_call_operand.hbm [shape: f32[8,128], index: 4, kind: output, shape index: {}]
  %s5 = sld [smem:[#allocation0]]
  $region30: #{tpu_custom_call.1} parent=0
    _
  %s7 = ssub.s32 1, %s5
  %s8 = scalar_select 0, %s7, %s5
  $region1: #{tpu_custom_call.1} parent=0
    #allocation2 [shape = 'u8[69632]{0}', space=vmem, size = 0x11000, scoped, tag = 'input window, operand 3, single buffered']
    #allocation3 [shape = 's32[1]{0}', space=sflag, size = 0x4, scoped, tag = 'scoped memory for tpu_custom_call.1']
    #allocation4 [shape = 's32[1]{0}', space=sflag, size = 0x4, scoped, tag = 'scoped memory for tpu_custom_call.1']
    #allocation5 [shape = 'u8[4096]{0}', space=vmem, size = 0x1000, scoped, tag = 'output window, operand 0, single buffered']
    %9 = vsyncpa [#allocation3], 0
    %10 = vsyncpa [#allocation4], 0
    // Predicated region
    $region2: #{tpu_custom_call.1} parent=1 // pred_check
      _
    $region3: #{tpu_custom_call.1} parent=1 // pred_check_branch
      %12 = sbr.rel (0) target = $region5
    $region4: #{tpu_custom_call.1} parent=1 // pred_region
      _
    $region5: #{tpu_custom_call.1} parent=1 // pred_fallthru
      _
    // Predicated region
    $region6: #{tpu_custom_call.1} parent=1 // pred_check
      _
    $region7: #{tpu_custom_call.1} parent=1 // pred_check_branch
      %14 = sbr.rel (0) target = $region9
    $region8: #{tpu_custom_call.1} parent=1 // pred_region
      _
    $region9: #{tpu_custom_call.1} parent=1 // pred_fallthru
      _
    // Predicated region
    $region10: #{tpu_custom_call.1} parent=1 // pred_check
      _
    $region11: #{tpu_custom_call.1} parent=1 // pred_check_branch
      %16 = sbr.rel (0) target = $region13
    $region12: #{tpu_custom_call.1} parent=1 // pred_region
      _
    $region13: #{tpu_custom_call.1} parent=1 // pred_fallthru
      _
    // Predicated region
    $region14: #{tpu_custom_call.1} parent=1 // pred_check
      _
    $region15: #{tpu_custom_call.1} parent=1 // pred_check_branch
      %18 = sbr.rel (0) target = $region17
    $region16: #{tpu_custom_call.1} parent=1 // pred_region
      %s20 = ssub.s32 2176, 2176
      %21 = vsyncadd [#allocation3], %s20
      %s22 = sshll.u32 [#allocation2], 4
      %s23 = int_to_ptr.vmem [resolvable:$true] %s22
      %28 = dma.hbm_to_vmem [thread:$0]  %s3, 2176, %s23, [#allocation3], 128, 128, 8
    $region17: #{tpu_custom_call.1} parent=1 // pred_fallthru
      _
    // Predicated region
    $region18: #{tpu_custom_call.1} parent=1 // pred_check
      _
    $region19: #{tpu_custom_call.1} parent=1 // pred_check_branch
      %30 = sbr.rel (0) target = $region21
    $region20: #{tpu_custom_call.1} parent=1 // pred_region
      %31 = dma.done [#allocation3], 2176
    $region21: #{tpu_custom_call.1} parent=1 // pred_fallthru
      _
    %v32 = vld [vmem:[%s0] sm:$0xff]
    %v33 = vld [vmem:[%s1] sm:$0xff]
    %v34 = vld [vmem:[%s1 + $0x8] sm:$0xff]
    %v35 = vld [vmem:[%s1 + $0x10] sm:$0xff]
    %v36 = vld [vmem:[%s1 + $0x18] sm:$0xff]
    %v37 = vld [vmem:[%s1 + $0x20] sm:$0xff]
    %v38 = vld [vmem:[%s1 + $0x28] sm:$0xff]
    %v39 = vld [vmem:[%s1 + $0x30] sm:$0xff]
    %v40 = vld [vmem:[%s1 + $0x38] sm:$0xff]
    %v41 = vld [vmem:[%s1 + $0x40] sm:$0xff]
    %v42 = vld [vmem:[%s1 + $0x48] sm:$0xff]
    %v43 = vld [vmem:[%s2] sm:$0xff]
    %v44 = vld [vmem:[#allocation2] sm:$0xff]
    %v45 = vld [vmem:[#allocation2 + $0x8] sm:$0xff]
    %v46 = vld [vmem:[#allocation2 + $0x10] sm:$0xff]
    %v47 = vld [vmem:[#allocation2 + $0x18] sm:$0xff]
    %v48 = vld [vmem:[#allocation2 + $0x20] sm:$0xff]
    %v49 = vld [vmem:[#allocation2 + $0x28] sm:$0xff]
    %v50 = vld [vmem:[#allocation2 + $0x30] sm:$0xff]
    %v51 = vld [vmem:[#allocation2 + $0x38] sm:$0xff]
    %v52 = vld [vmem:[#allocation2 + $0x40] sm:$0xff]
    %v53 = vld [vmem:[#allocation2 + $0x48] sm:$0xff]
    %v54 = vld [vmem:[#allocation2 + $0x50] sm:$0xff]
    %v55 = vld [vmem:[#allocation2 + $0x58] sm:$0xff]
    %v56 = vld [vmem:[#allocation2 + $0x60] sm:$0xff]
    %v57 = vld [vmem:[#allocation2 + $0x68] sm:$0xff]
    %v58 = vld [vmem:[#allocation2 + $0x70] sm:$0xff]
    %v59 = vld [vmem:[#allocation2 + $0x78] sm:$0xff]
    %v60 = vld [vmem:[#allocation2 + $0x80] sm:$0xff]
    %v61 = vand.u32 2147483647, %v32
    %vm62 = vcmask 130048
    %v63 = vsel %vm62, %v61, 0.0
    %v64 = vrot.slane %v63, 4
    %v65 = vadd.f32 %v63, %v64
    %v66 = vrot.slane %v65, 2
    %v67 = vadd.f32 %v65, %v66
    %v68 = vrot.slane %v67, 1
    %v69 = vadd.f32 %v67, %v68
    %v70 = vmax.f32 %v69, 1e-12
    %v71 = vmul.f32 %v32, 10.0
    %v72 = vrcp.pop %v70
    %v73 = vmul.f32 %v71, %v72
    %v74 = vlaneseq
    %v75 = vshrl.u32 %v74, 7
    %v76 = vsub.s32 0, %v75
    %v77 = vrot.slane %v43, %v76
    %v79 = vsel %vm62, %v73, 0
    %81 = vmatprep.subr.mxu0 0.0
    %82 = vmatpush1.msra.mxu0 0.0
    %83 = vmatprep.subr.mxu0 0.0
    %84 = vmatpush1.msra.mxu0 0.0
    %85 = vmatprep.subr.mxu0 0.0
    %86 = vmatpush1.msra.mxu0 0.0
    %87 = vmatprep.subr.mxu0 0.0
    %88 = vmatpush1.msra.mxu0 0.0
    %89 = vmatprep.subr.mxu0 0.0
    %90 = vmatpush1.msra.mxu0 0.0
    %91 = vmatprep.subr.mxu0 0.0
    %92 = vmatpush1.msra.mxu0 0.0
    %93 = vmatprep.subr.mxu0 0.0
    %94 = vmatpush1.msra.mxu0 0.0
    %95 = vmatprep.subr.mxu0 0.0
    %96 = vmatpush1.msra.mxu0 0.0
    %97 = vmatprep.subr.mxu0 0.0
    %98 = vmatpush1.msra.mxu0 0.0
    %99 = vmatprep.subr.mxu0 0.0
    %100 = vmatpush1.msra.mxu0 0.0
    %101 = vmatprep.subr.mxu0 0.0
    %102 = vmatpush1.msra.mxu0 0.0
    %103 = vmatprep.subr.mxu0 0.0
    %104 = vmatpush1.msra.mxu0 0.0
    %105 = vmatprep.subr.mxu0 0.0
    %106 = vmatpush1.msra.mxu0 0.0
    %107 = vmatprep.subr.mxu0 0.0
    %108 = vmatpush1.msra.mxu0 0.0
    %109 = vmatprep.subr.mxu0 0.0
    %110 = vmatpush1.msra.mxu0 %v34
    %111 = vmatprep.subr.mxu0 0.0
    %112 = vmatpush1.msra.mxu0 %v33
    %113 = vmatprep.subr.mxu0 0.0
    %114 = vmatpush2.msra.mxu0 0.0
    %115 = vmatprep.subr.mxu0 0.0
    %116 = vmatpush2.msra.mxu0 0.0
    %117 = vmatprep.subr.mxu0 0.0
    %118 = vmatpush2.msra.mxu0 0.0
    %119 = vmatprep.subr.mxu0 0.0
    %120 = vmatpush2.msra.mxu0 0.0
    %121 = vmatprep.subr.mxu0 0.0
    %122 = vmatpush2.msra.mxu0 0.0
    %123 = vmatprep.subr.mxu0 0.0
    %124 = vmatpush2.msra.mxu0 0.0
    %125 = vmatprep.subr.mxu0 0.0
    %126 = vmatpush2.msra.mxu0 0.0
    %127 = vmatprep.subr.mxu0 0.0
    %128 = vmatpush2.msra.mxu0 0.0
    %129 = vmatprep.subr.mxu0 0.0
    %130 = vmatpush2.msra.mxu0 0.0
    %131 = vmatprep.subr.mxu0 0.0
    %132 = vmatpush2.msra.mxu0 0.0
    %133 = vmatprep.subr.mxu0 0.0
    %134 = vmatpush2.msra.mxu0 0.0
    %135 = vmatprep.subr.mxu0 0.0
    %136 = vmatpush2.msra.mxu0 0.0
    %137 = vmatprep.subr.mxu0 0.0
    %138 = vmatpush2.msra.mxu0 0.0
    %139 = vmatprep.subr.mxu0 0.0
    %140 = vmatpush2.msra.mxu0 0.0
    %141 = vmatprep.subr.mxu0 0.0
    %142 = vmatpush2.msra.mxu0 0.0
    %143 = vmatprep.subr.mxu0 0.0
    %144 = vmatpush2.msra.mxu0 0.0
    %145 = vmatprep.mubr.f32.mxu0 0.0
    %146 = vmatmul.mubr.f32.gmra.mxu0 %v79
    %v147 = vpop.f32.mrf.mxu0
    %v148 = vadd.f32 %v77, %v147
    %v149 = vpop.f32.mrf.mxu0
    %150 = vdwg.mxu0
    %v151 = vlaneseq
    %v152 = vshrl.u32 %v151, 7
    %v153 = vsub.s32 1, %v152
    %v154 = vrot.slane %v43, %v153
    %vm155 = vcmask 261120
    %v157 = vsel %vm155, %v148, 0
    %159 = vmatprep.subr.mxu0 0.0
    %160 = vmatpush1.msra.mxu0 0.0
    %161 = vmatprep.subr.mxu0 0.0
    %162 = vmatpush1.msra.mxu0 0.0
    %163 = vmatprep.subr.mxu0 0.0
    %164 = vmatpush1.msra.mxu0 0.0
    %165 = vmatprep.subr.mxu0 0.0
    %166 = vmatpush1.msra.mxu0 0.0
    %167 = vmatprep.subr.mxu0 0.0
    %168 = vmatpush1.msra.mxu0 0.0
    %169 = vmatprep.subr.mxu0 0.0
    %170 = vmatpush1.msra.mxu0 0.0
    %171 = vmatprep.subr.mxu0 0.0
    %172 = vmatpush1.msra.mxu0 0.0
    %173 = vmatprep.subr.mxu0 0.0
    %174 = vmatpush1.msra.mxu0 0.0
    %175 = vmatprep.subr.mxu0 0.0
    %176 = vmatpush1.msra.mxu0 0.0
    %177 = vmatprep.subr.mxu0 0.0
    %178 = vmatpush1.msra.mxu0 0.0
    %179 = vmatprep.subr.mxu0 0.0
    %180 = vmatpush1.msra.mxu0 0.0
    %181 = vmatprep.subr.mxu0 0.0
    %182 = vmatpush1.msra.mxu0 0.0
    %183 = vmatprep.subr.mxu0 0.0
    %184 = vmatpush1.msra.mxu0 %v38
    %185 = vmatprep.subr.mxu0 0.0
    %186 = vmatpush1.msra.mxu0 %v37
    %187 = vmatprep.subr.mxu0 0.0
    %188 = vmatpush1.msra.mxu0 %v36
    %189 = vmatprep.subr.mxu0 0.0
    %190 = vmatpush1.msra.mxu0 %v35
    %191 = vmatprep.subr.mxu0 0.0
    %192 = vmatpush2.msra.mxu0 0.0
    %193 = vmatprep.subr.mxu0 0.0
    %194 = vmatpush2.msra.mxu0 0.0
    %195 = vmatprep.subr.mxu0 0.0
    %196 = vmatpush2.msra.mxu0 0.0
    %197 = vmatprep.subr.mxu0 0.0
    %198 = vmatpush2.msra.mxu0 0.0
    %199 = vmatprep.subr.mxu0 0.0
    %200 = vmatpush2.msra.mxu0 0.0
    %201 = vmatprep.subr.mxu0 0.0
    %202 = vmatpush2.msra.mxu0 0.0
    %203 = vmatprep.subr.mxu0 0.0
    %204 = vmatpush2.msra.mxu0 0.0
    %205 = vmatprep.subr.mxu0 0.0
    %206 = vmatpush2.msra.mxu0 0.0
    %207 = vmatprep.subr.mxu0 0.0
    %208 = vmatpush2.msra.mxu0 0.0
    %209 = vmatprep.subr.mxu0 0.0
    %210 = vmatpush2.msra.mxu0 0.0
    %211 = vmatprep.subr.mxu0 0.0
    %212 = vmatpush2.msra.mxu0 0.0
    %213 = vmatprep.subr.mxu0 0.0
    %214 = vmatpush2.msra.mxu0 0.0
    %215 = vmatprep.subr.mxu0 0.0
    %216 = vmatpush2.msra.mxu0 0.0
    %217 = vmatprep.subr.mxu0 0.0
    %218 = vmatpush2.msra.mxu0 0.0
    %219 = vmatprep.subr.mxu0 0.0
    %220 = vmatpush2.msra.mxu0 0.0
    %221 = vmatprep.subr.mxu0 0.0
    %222 = vmatpush2.msra.mxu0 0.0
    %223 = vmatprep.mubr.f32.mxu0 0.0
    %224 = vmatmul.mubr.f32.gmra.mxu0 %v157
    %v225 = vpop.f32.mrf.mxu0
    %v226 = vadd.f32 %v154, %v225
    %v227 = vpop.f32.mrf.mxu0
    %228 = vdwg.mxu0
    %230 = vset.pattern.permute.xlu0 24
    %231 = vperm.xlu0 %230, %v32
    %v232 = vpop.permute.xlu0 %231
    %v234 = vmul.f32 %v226, %v232
    %235 = vrot.lane.b32.xlu0 %v32, 112
    %v236 = vpop.permute.xlu0 %235
    %vm237 = vcmask 64512
    %v238 = vsel %vm237, %v236, 0
    %240 = vmatprep.subr.mxu0 0.0
    %241 = vmatpush1.msra.mxu0 0.0
    %242 = vmatprep.subr.mxu0 0.0
    %243 = vmatpush1.msra.mxu0 0.0
    %244 = vmatprep.subr.mxu0 0.0
    %245 = vmatpush1.msra.mxu0 0.0
    %246 = vmatprep.subr.mxu0 0.0
    %247 = vmatpush1.msra.mxu0 0.0
    %248 = vmatprep.subr.mxu0 0.0
    %249 = vmatpush1.msra.mxu0 0.0
    %250 = vmatprep.subr.mxu0 0.0
    %251 = vmatpush1.msra.mxu0 0.0
    %252 = vmatprep.subr.mxu0 0.0
    %253 = vmatpush1.msra.mxu0 0.0
    %254 = vmatprep.subr.mxu0 0.0
    %255 = vmatpush1.msra.mxu0 0.0
    %256 = vmatprep.subr.mxu0 0.0
    %257 = vmatpush1.msra.mxu0 0.0
    %258 = vmatprep.subr.mxu0 0.0
    %259 = vmatpush1.msra.mxu0 0.0
    %260 = vmatprep.subr.mxu0 0.0
    %261 = vmatpush1.msra.mxu0 0.0
    %262 = vmatprep.subr.mxu0 0.0
    %263 = vmatpush1.msra.mxu0 0.0
    %264 = vmatprep.subr.mxu0 0.0
    %265 = vmatpush1.msra.mxu0 0.0
    %266 = vmatprep.subr.mxu0 0.0
    %267 = vmatpush1.msra.mxu0 0.0
    %268 = vmatprep.subr.mxu0 0.0
    %269 = vmatpush1.msra.mxu0 0.0
    %270 = vmatprep.subr.mxu0 0.0
    %271 = vmatpush1.msra.mxu0 %v234
    %272 = vmatprep.subr.mxu0 0.0
    %273 = vmatpush2.msra.mxu0 0.0
    %274 = vmatprep.subr.mxu0 0.0
    %275 = vmatpush2.msra.mxu0 0.0
    %276 = vmatprep.subr.mxu0 0.0
    %277 = vmatpush2.msra.mxu0 0.0
    %278 = vmatprep.subr.mxu0 0.0
    %279 = vmatpush2.msra.mxu0 0.0
    %280 = vmatprep.subr.mxu0 0.0
    %281 = vmatpush2.msra.mxu0 0.0
    %282 = vmatprep.subr.mxu0 0.0
    %283 = vmatpush2.msra.mxu0 0.0
    %284 = vmatprep.subr.mxu0 0.0
    %285 = vmatpush2.msra.mxu0 0.0
    %286 = vmatprep.subr.mxu0 0.0
    %287 = vmatpush2.msra.mxu0 0.0
    %288 = vmatprep.subr.mxu0 0.0
    %289 = vmatpush2.msra.mxu0 0.0
    %290 = vmatprep.subr.mxu0 0.0
    %291 = vmatpush2.msra.mxu0 0.0
    %292 = vmatprep.subr.mxu0 0.0
    %293 = vmatpush2.msra.mxu0 0.0
    %294 = vmatprep.subr.mxu0 0.0
    %295 = vmatpush2.msra.mxu0 0.0
    %296 = vmatprep.subr.mxu0 0.0
    %297 = vmatpush2.msra.mxu0 0.0
    %298 = vmatprep.subr.mxu0 0.0
    %299 = vmatpush2.msra.mxu0 0.0
    %300 = vmatprep.subr.mxu0 0.0
    %301 = vmatpush2.msra.mxu0 0.0
    %302 = vmatprep.subr.mxu0 0.0
    %303 = vmatpush2.msra.mxu0 0.0
    %304 = vmatprep.mubr.f32.mxu0 0.0
    %305 = vmatmul.mubr.f32.gmra.mxu0 %v238
    %v306 = vpop.f32.mrf.mxu0
    %v307 = vadd.f32 0.0, %v306
    %v308 = vpop.f32.mrf.mxu0
    %309 = vdwg.mxu0
    %v311 = vsel %vm155, %v307, 0
    %313 = vmatprep.subr.mxu0 0.0
    %314 = vmatpush1.msra.mxu0 0.0
    %315 = vmatprep.subr.mxu0 0.0
    %316 = vmatpush1.msra.mxu0 0.0
    %317 = vmatprep.subr.mxu0 0.0
    %318 = vmatpush1.msra.mxu0 0.0
    %319 = vmatprep.subr.mxu0 0.0
    %320 = vmatpush1.msra.mxu0 0.0
    %321 = vmatprep.subr.mxu0 0.0
    %322 = vmatpush1.msra.mxu0 0.0
    %323 = vmatprep.subr.mxu0 0.0
    %324 = vmatpush1.msra.mxu0 0.0
    %325 = vmatprep.subr.mxu0 0.0
    %326 = vmatpush1.msra.mxu0 0.0
    %327 = vmatprep.subr.mxu0 0.0
    %328 = vmatpush1.msra.mxu0 0.0
    %329 = vmatprep.subr.mxu0 0.0
    %330 = vmatpush1.msra.mxu0 0.0
    %331 = vmatprep.subr.mxu0 0.0
    %332 = vmatpush1.msra.mxu0 0.0
    %333 = vmatprep.subr.mxu0 0.0
    %334 = vmatpush1.msra.mxu0 0.0
    %335 = vmatprep.subr.mxu0 0.0
    %336 = vmatpush1.msra.mxu0 0.0
    %337 = vmatprep.subr.mxu0 0.0
    %338 = vmatpush1.msra.mxu0 %v42
    %339 = vmatprep.subr.mxu0 0.0
    %340 = vmatpush1.msra.mxu0 %v41
    %341 = vmatprep.subr.mxu0 0.0
    %342 = vmatpush1.msra.mxu0 %v40
    %343 = vmatprep.subr.mxu0 0.0
    %344 = vmatpush1.msra.mxu0 %v39
    %345 = vmatprep.subr.mxu0 0.0
    %346 = vmatpush2.msra.mxu0 0.0
    %347 = vmatprep.subr.mxu0 0.0
    %348 = vmatpush2.msra.mxu0 0.0
    %349 = vmatprep.subr.mxu0 0.0
    %350 = vmatpush2.msra.mxu0 0.0
    %351 = vmatprep.subr.mxu0 0.0
    %352 = vmatpush2.msra.mxu0 0.0
    %353 = vmatprep.subr.mxu0 0.0
    %354 = vmatpush2.msra.mxu0 0.0
    %355 = vmatprep.subr.mxu0 0.0
    %356 = vmatpush2.msra.mxu0 0.0
    %357 = vmatprep.subr.mxu0 0.0
    %358 = vmatpush2.msra.mxu0 0.0
    %359 = vmatprep.subr.mxu0 0.0
    %360 = vmatpush2.msra.mxu0 0.0
    %361 = vmatprep.subr.mxu0 0.0
    %362 = vmatpush2.msra.mxu0 0.0
    %363 = vmatprep.subr.mxu0 0.0
    %364 = vmatpush2.msra.mxu0 0.0
    %365 = vmatprep.subr.mxu0 0.0
    %366 = vmatpush2.msra.mxu0 0.0
    %367 = vmatprep.subr.mxu0 0.0
    %368 = vmatpush2.msra.mxu0 0.0
    %369 = vmatprep.subr.mxu0 0.0
    %370 = vmatpush2.msra.mxu0 0.0
    %371 = vmatprep.subr.mxu0 0.0
    %372 = vmatpush2.msra.mxu0 0.0
    %373 = vmatprep.subr.mxu0 0.0
    %374 = vmatpush2.msra.mxu0 0.0
    %375 = vmatprep.subr.mxu0 0.0
    %376 = vmatpush2.msra.mxu0 0.0
    %377 = vmatprep.mubr.f32.mxu0 0.0
    %378 = vmatmul.mubr.f32.gmra.mxu0 %v311
    %v379 = vpop.f32.mrf.mxu0
    %v380 = vadd.f32 0.0, %v379
    %v381 = vpop.f32.mrf.mxu0
    %382 = vdwg.mxu0
    %383 = vset.pattern.permute.xlu0 25
    %384 = vperm.xlu0 %383, %v32
    %v385 = vpop.permute.xlu0 %384
    %v387 = vmul.f32 %v380, %v385
    %v388 = vlaneseq
    %v389 = vshrl.u32 %v388, 7
    %v390 = vsub.s32 2, %v389
    %v391 = vrot.slane %v43, %v390
    %v392 = vadd.f32 %v387, %v391
    %v393 = vmul.f32 %v392, 0.70710677
    %394 = vset.pattern.permute.xlu0 26
    %395 = vperm.xlu0 %394, %v32
    %v396 = vpop.permute.xlu0 %395
    %v398 = vmul.f32 %v396, %v226
    %v399 = vadd.f32 %v393, %v398
    %v400 = vmax.f32 %v399, 0.0
    %402 = vrot.lane.b32.xlu0 %v400, 32
    %v403 = vpop.permute.xlu0 %402
    %405 = vrot.lane.b32.xlu0 %v400, 64
    %v406 = vpop.permute.xlu0 %405
    %408 = vrot.lane.b32.xlu0 %v400, 96
    %v409 = vpop.permute.xlu0 %408
    %v411 = vsel %vm155, %v400, %v403
    %vm412 = vcmask 523264
    %v413 = vsel %vm412, %v411, %v406
    %vm414 = vcmask 785408
    %v415 = vsel %vm414, %v413, %v409
    %v416 = vmul.f32 %v415, %v44
    %v417 = vrot.slane %v416, 4
    %v418 = vadd.f32 %v416, %v417
    %v419 = vrot.slane %v418, 2
    %v420 = vadd.f32 %v418, %v419
    %v421 = vrot.slane %v420, 1
    %v422 = vadd.f32 %v420, %v421
    %v424 = vrot.slane %v43, 3
    %426 = vmatprep.subr.mxu0 0.0
    %427 = vmatpush1.msra.mxu0 %v60
    %428 = vmatprep.subr.mxu0 0.0
    %429 = vmatpush1.msra.mxu0 %v59
    %430 = vmatprep.subr.mxu0 0.0
    %431 = vmatpush1.msra.mxu0 %v58
    %432 = vmatprep.subr.mxu0 0.0
    %433 = vmatpush1.msra.mxu0 %v57
    %434 = vmatprep.subr.mxu0 0.0
    %435 = vmatpush1.msra.mxu0 %v56
    %436 = vmatprep.subr.mxu0 0.0
    %437 = vmatpush1.msra.mxu0 %v55
    %438 = vmatprep.subr.mxu0 0.0
    %439 = vmatpush1.msra.mxu0 %v54
    %440 = vmatprep.subr.mxu0 0.0
    %441 = vmatpush1.msra.mxu0 %v53
    %442 = vmatprep.subr.mxu0 0.0
    %443 = vmatpush1.msra.mxu0 %v52
    %444 = vmatprep.subr.mxu0 0.0
    %445 = vmatpush1.msra.mxu0 %v51
    %446 = vmatprep.subr.mxu0 0.0
    %447 = vmatpush1.msra.mxu0 %v50
    %448 = vmatprep.subr.mxu0 0.0
    %449 = vmatpush1.msra.mxu0 %v49
    %450 = vmatprep.subr.mxu0 0.0
    %451 = vmatpush1.msra.mxu0 %v48
    %452 = vmatprep.subr.mxu0 0.0
    %453 = vmatpush1.msra.mxu0 %v47
    %454 = vmatprep.subr.mxu0 0.0
    %455 = vmatpush1.msra.mxu0 %v46
    %456 = vmatprep.subr.mxu0 0.0
    %457 = vmatpush1.msra.mxu0 %v45
    %458 = vmatprep.subr.mxu0 0.0
    %459 = vmatpush2.msra.mxu0 0.0
    %460 = vmatprep.subr.mxu0 0.0
    %461 = vmatpush2.msra.mxu0 0.0
    %462 = vmatprep.subr.mxu0 0.0
    %463 = vmatpush2.msra.mxu0 0.0
    %464 = vmatprep.subr.mxu0 0.0
    %465 = vmatpush2.msra.mxu0 0.0
    %466 = vmatprep.subr.mxu0 0.0
    %467 = vmatpush2.msra.mxu0 0.0
    %468 = vmatprep.subr.mxu0 0.0
    %469 = vmatpush2.msra.mxu0 0.0
    %470 = vmatprep.subr.mxu0 0.0
    %471 = vmatpush2.msra.mxu0 0.0
    %472 = vmatprep.subr.mxu0 0.0
    %473 = vmatpush2.msra.mxu0 0.0
    %474 = vmatprep.subr.mxu0 0.0
    %475 = vmatpush2.msra.mxu0 0.0
    %476 = vmatprep.subr.mxu0 0.0
    %477 = vmatpush2.msra.mxu0 0.0
    %478 = vmatprep.subr.mxu0 0.0
    %479 = vmatpush2.msra.mxu0 0.0
    %480 = vmatprep.subr.mxu0 0.0
    %481 = vmatpush2.msra.mxu0 0.0
    %482 = vmatprep.subr.mxu0 0.0
    %483 = vmatpush2.msra.mxu0 0.0
    %484 = vmatprep.subr.mxu0 0.0
    %485 = vmatpush2.msra.mxu0 0.0
    %486 = vmatprep.subr.mxu0 0.0
    %487 = vmatpush2.msra.mxu0 0.0
    %488 = vmatprep.subr.mxu0 0.0
    %489 = vmatpush2.msra.mxu0 0.0
    %490 = vmatprep.mubr.f32.mxu0 0.0
    %491 = vmatmul.mubr.f32.gmra.mxu0 %v422
    %v492 = vpop.f32.mrf.mxu0
    %v493 = vadd.f32 %v424, %v492
    %v494 = vpop.f32.mrf.mxu0
    %495 = vdwg.mxu0
    %v496 = vlaneseq
    %v497 = vshrl.u32 %v496, 7
    %v498 = vsub.s32 0, %v497
    %v499 = vrot.slane %v493, %v498
    %500 = vst [vmem:[#allocation5] sm:$0xff] %v499
    // Predicated region
    $region22: #{tpu_custom_call.1} parent=1 // pred_check
      _
    $region23: #{tpu_custom_call.1} parent=1 // pred_check_branch
      %502 = sbr.rel (0) target = $region25
    $region24: #{tpu_custom_call.1} parent=1 // pred_region
      %s504 = ssub.s32 128, 128
      %505 = vsyncadd [#allocation4], %s504
      %s507 = sshll.u32 [#allocation5], 4
      %s508 = int_to_ptr.vmem [resolvable:$true] %s507
      %510 = dma.vmem_to_hbm [thread:$0]  %s508, 128, %s4, [#allocation4]
    $region25: #{tpu_custom_call.1} parent=1 // pred_fallthru
      _
    // Predicated region
    $region26: #{tpu_custom_call.1} parent=1 // pred_check
      _
    $region27: #{tpu_custom_call.1} parent=1 // pred_check_branch
      %512 = sbr.rel (0) target = $region29
    $region28: #{tpu_custom_call.1} parent=1 // pred_region
      %513 = dma.done [#allocation4], 128
    $region29: #{tpu_custom_call.1} parent=1 // pred_fallthru
      _
    %514 = vsyncpa [#allocation3], 1
    %515 = vsyncpa [#allocation4], 1

</llo_original>
